<compile_context>
chip_gen: v6e
topology: v6e:2x2x1
jax: 0.10.0
libtpu: 0.0.40
codegen_flags: <defaults>
</compile_context>

<pallas_src>
import functools
import math

import jax
import jax.numpy as jnp
from jax.experimental import pallas as pl
from jax.experimental.pallas import tpu as pltpu


def _sublane_multiple(dtype) -> int:
    """Sublane granularity for a dtype: 8 (f32), 16 (bf16/f16), 32 (int8/fp8)."""
    itemsize = jnp.dtype(dtype).itemsize
    return max(8, 32 // max(itemsize, 1))


def _pick_row_tile(m_rows: int, sub: int, tm_max: int) -> int:
    """Pick the packed-row tile size.

    Targets >= 8 grid steps, caps at tm_max (~512-1024 already reaches ~85% of
    HBM roofline), rounds to the dtype sublane multiple, and prefers a tile
    that divides m_rows exactly so the wrapper never pads (a pad is an extra
    HBM read+write pass in XLA before the kernel).
    """
    desired = (m_rows // 8 // sub) * sub
    desired = max(sub, min(desired, tm_max))
    lo = max(sub, (desired // 2 // sub) * sub)
    cand = desired
    while cand >= lo:
        if m_rows % cand == 0:
            return cand
        cand -= sub
    return desired  # no nice divisor in range -> small one-off pad


def _patch_split_kernel(x_ref, w_ref, seg_ref, gb_ref, o_ref, *, cout, eps):
    """One (tm, C) row tile: reduction matmul -> segmented LayerNorm -> affine.

    x_ref:   (tm, pack*cin)            native dtype
    w_ref:   (pack*cin, pack*cout)     block-diagonal Linear weight, native dtype
    seg_ref: (pack*cout, pack*cout)    bf16 block-diag of ones: MXU does the
                                       per-segment sum AND the lane broadcast
    gb_ref:  (2, pack*cout)            f32 [gamma; beta], tiled across segments
    o_ref:   (tm, pack*cout)
    """
    y = jnp.dot(x_ref[...], w_ref[...], preferred_element_type=jnp.float32)

    seg = seg_ref[...]  # bf16, entries are exactly 0/1

    def seg_sum(v):
        # Error-free hi/lo bf16 split so the single-pass bf16 MXU matmul gives
        # an (almost) f32-exact segmented sum broadcast across segment lanes.
        hi = v.astype(jnp.bfloat16)
        lo = (v - hi.astype(jnp.float32)).astype(jnp.bfloat16)
        return (jnp.dot(hi, seg, preferred_element_type=jnp.float32)
                + jnp.dot(lo, seg, preferred_element_type=jnp.float32))

    inv_n = jnp.float32(1.0 / cout)
    mean = seg_sum(y) * inv_n                       # (tm, C), lane-broadcast
    centered = y - mean
    var = seg_sum(centered * centered) * inv_n      # (tm, C)
    inv_std = jax.lax.rsqrt(var + eps)

    gb = gb_ref[...]                                # (2, C) f32
    o_ref[...] = (centered * (inv_std * gb[0, :]) + gb[1, :]).astype(o_ref.dtype)


def patch_spliting_forward(x, w_reduction, gamma, beta, *, factor=2, eps=1e-5,
                           tm_max=1024):
    """x: [..., H/2, W/2, dim*dim_increment]  (channels-last).

    w_reduction: (out_features, in_features) = (dim*factor, dim*dim_increment),
                 PyTorch nn.Linear weight layout.
    gamma, beta: (dim*factor,) LayerNorm affine params.
    Returns: [..., H/2, (W/2)*factor, dim] with dim = (dim*factor)//factor.
    """
    cin = x.shape[-1]
    cout = w_reduction.shape[0]
    assert w_reduction.shape == (cout, cin)

    lead_shape = x.shape[:-1]
    m = math.prod(lead_shape)
    out_dtype = x.dtype

    x2d = x.reshape(m, cin)
    w_t = jnp.transpose(w_reduction).astype(out_dtype)   # (cin, cout)

    # Lane-packing: pair rows into full 128-lane vregs when channels are
    # 64-wide (Swin default dim=32, factor=dim_increment=2 -> cin=cout=64).
    pack = 2 if (cin == 64 and cout == 64) else 1
    c_in_p, c_out_p = pack * cin, pack * cout

    if pack == 2:
        zeros_w = jnp.zeros((cin, cout), dtype=w_t.dtype)
        w_k = jnp.block([[w_t, zeros_w], [zeros_w, w_t]])   # (128,128) block-diag
        g_k = jnp.tile(gamma.astype(jnp.float32), pack)
        b_k = jnp.tile(beta.astype(jnp.float32), pack)
        ones_s = jnp.ones((cout, cout), dtype=jnp.bfloat16)
        zeros_s = jnp.zeros((cout, cout), dtype=jnp.bfloat16)
        seg = jnp.block([[ones_s, zeros_s], [zeros_s, ones_s]])   # (128,128)
    else:
        w_k = w_t
        g_k = gamma.astype(jnp.float32)
        b_k = beta.astype(jnp.float32)
        seg = jnp.ones((cout, cout), dtype=jnp.bfloat16)
    gb = jnp.stack([g_k, b_k], axis=0)                    # (2, pack*cout) f32

    m_rows = pl.cdiv(m, pack)                             # packed row count
    sub = _sublane_multiple(out_dtype)
    tm = _pick_row_tile(m_rows, sub, tm_max)
    m_rows_pad = pl.cdiv(m_rows, tm) * tm

    # Single pad covers both the pack remainder and the ragged last tile;
    # for typical Swin shapes it is a no-op.
    pad_rows = m_rows_pad * pack - m
    if pad_rows:
        x2d = jnp.pad(x2d, ((0, pad_rows), (0, 0)))
    xp = x2d.reshape(m_rows_pad, c_in_p)

    grid = (m_rows_pad // tm,)
    out2d = pl.pallas_call(
        functools.partial(_patch_split_kernel, cout=cout, eps=eps),
        out_shape=jax.ShapeDtypeStruct((m_rows_pad, c_out_p), out_dtype),
        grid_spec=pltpu.PrefetchScalarGridSpec(
            num_scalar_prefetch=0,
            grid=grid,
            in_specs=[
                pl.BlockSpec((tm, c_in_p), lambda i: (i, 0)),
                pl.BlockSpec((c_in_p, c_out_p), lambda i: (0, 0)),
                pl.BlockSpec((c_out_p, c_out_p), lambda i: (0, 0)),
                pl.BlockSpec((2, c_out_p), lambda i: (0, 0)),
            ],
            out_specs=pl.BlockSpec((tm, c_out_p), lambda i: (i, 0)),
        ),
        compiler_params=pltpu.CompilerParams(
            dimension_semantics=("parallel",),
        ),
    )(xp, w_k, seg, gb)

    # Undo lane packing / padding (pure slices + reshapes, no kernel work).
    y2d = out2d.reshape(m_rows_pad * pack, cout)[:m]
    y = y2d.reshape(lead_shape + (cout,))
    # [..., W/2, dim*factor] -> [..., W/2*factor, dim]
    y = y.reshape(y.shape[:-2] + (y.shape[-2] * factor, y.shape[-1] // factor))
    return y


def _reference(x, w_reduction, gamma, beta, *, factor=2, eps=1e-5):
    y = jnp.einsum("...i,oi->...o", x.astype(jnp.float32),
                   w_reduction.astype(jnp.float32))
    mean = jnp.mean(y, axis=-1, keepdims=True)
    var = jnp.mean((y - mean) ** 2, axis=-1, keepdims=True)
    y = (y - mean) * jax.lax.rsqrt(var + eps)
    y = y * gamma.astype(jnp.float32) + beta.astype(jnp.float32)
    y = y.reshape(y.shape[:-2] + (y.shape[-2] * factor, y.shape[-1] // factor))
    return y.astype(x.dtype)


if __name__ == "__main__":
    # Module config: dim=32, factor=2, dim_increment=2
    dim = 32
    factor = 2
    dim_increment = 2
    cin = dim * dim_increment   # 64
    cout = dim * factor         # 64

    B, H2, W2 = 2, 8, 8         # input spatial is already H/2, W/2

    key = jax.random.PRNGKey(0)
    kx, kw = jax.random.split(key)

    # Input: [B, H/2, W/2, 2*dim]
    x = jax.random.normal(kx, (B, H2, W2, cin), dtype=jnp.float32)

    # Linear weight in PyTorch (out, in) layout; LayerNorm affine params.
    bound = 1.0 / (cin ** 0.5)
    w_red = jax.random.uniform(kw, (cout, cin), minval=-bound, maxval=bound,
                               dtype=jnp.float32)
    gamma = jnp.ones((cout,), dtype=jnp.float32) * 1.1
    beta = jnp.full((cout,), 0.05, dtype=jnp.float32)

    out = patch_spliting_forward(x, w_red, gamma, beta, factor=factor)
    out = jax.block_until_ready(out)

    ref = _reference(x, w_red, gamma, beta, factor=factor)
    assert out.shape == (B, H2, W2 * factor, dim), out.shape
    assert jnp.allclose(out, ref, atol=1e-4, rtol=1e-4), "mismatch vs reference"

    print("KERNEL_OK")
</pallas_src>

<mosaic_0001>
module attributes {stable_mosaic.version = 11 : i64} {
  func.func @_patch_split_kernel(%arg0: i32, %arg1: memref<8x128xf32, #tpu.memory_space<vmem>>, %arg2: memref<128x128xf32, #tpu.memory_space<vmem>>, %arg3: memref<128x128xbf16, #tpu.memory_space<vmem>>, %arg4: memref<2x128xf32, #tpu.memory_space<vmem>>, %arg5: memref<8x128xf32, #tpu.memory_space<vmem>>) attributes {dimension_semantics = [#tpu.dimension_semantics<parallel>], iteration_bounds = array<i64: 8>, scalar_prefetch = 0 : i64, scratch_operands = 0 : i64, tpu.core_type = #tpu.core_type<tc>, window_params = [{transform_indices = @transform_0, window_bounds = array<i64: 8, 128>}, {pipeline_mode = #tpu.pipeline_mode<synchronous>, transform_indices = @transform_1, window_bounds = array<i64: 128, 128>}, {pipeline_mode = #tpu.pipeline_mode<synchronous>, transform_indices = @transform_2, window_bounds = array<i64: 128, 128>}, {pipeline_mode = #tpu.pipeline_mode<synchronous>, transform_indices = @transform_3, window_bounds = array<i64: 2, 128>}, {transform_indices = @transform_4, window_bounds = array<i64: 8, 128>}]} {
    %c0 = arith.constant 0 : index
    %c0_0 = arith.constant 0 : index
    %0 = vector.load %arg1[%c0, %c0_0] : memref<8x128xf32, #tpu.memory_space<vmem>>, vector<8x128xf32>
    %c0_1 = arith.constant 0 : index
    %c0_2 = arith.constant 0 : index
    %1 = vector.load %arg2[%c0_1, %c0_2] : memref<128x128xf32, #tpu.memory_space<vmem>>, vector<128x128xf32>
    %cst = arith.constant dense<0.000000e+00> : vector<8x128xf32>
    %2 = tpu.matmul %0, %1, %cst {dimension_numbers = #tpu.dot_dimension_numbers<[1], [0], [0], [1], [0, 0, 1, 1], [], []>} : vector<8x128xf32>, vector<128x128xf32>, vector<8x128xf32> -> vector<8x128xf32>
    %c0_3 = arith.constant 0 : index
    %c0_4 = arith.constant 0 : index
    %3 = vector.load %arg3[%c0_3, %c0_4] : memref<128x128xbf16, #tpu.memory_space<vmem>>, vector<128x128xbf16>
    %4 = arith.truncf %2 : vector<8x128xf32> to vector<8x128xbf16>
    %5 = arith.extf %4 : vector<8x128xbf16> to vector<8x128xf32>
    %6 = arith.subf %2, %5 : vector<8x128xf32>
    %7 = arith.truncf %6 : vector<8x128xf32> to vector<8x128xbf16>
    %cst_5 = arith.constant dense<0.000000e+00> : vector<8x128xf32>
    %8 = tpu.matmul %4, %3, %cst_5 {dimension_numbers = #tpu.dot_dimension_numbers<[1], [0], [0], [1], [0, 0, 1, 1], [], []>} : vector<8x128xbf16>, vector<128x128xbf16>, vector<8x128xf32> -> vector<8x128xf32>
    %cst_6 = arith.constant dense<0.000000e+00> : vector<8x128xf32>
    %9 = tpu.matmul %7, %3, %cst_6 {dimension_numbers = #tpu.dot_dimension_numbers<[1], [0], [0], [1], [0, 0, 1, 1], [], []>} : vector<8x128xbf16>, vector<128x128xbf16>, vector<8x128xf32> -> vector<8x128xf32>
    %10 = arith.addf %8, %9 : vector<8x128xf32>
    %cst_7 = arith.constant 1.562500e-02 : f32
    %11 = vector.broadcast %cst_7 : f32 to vector<8x128xf32>
    %12 = arith.mulf %10, %11 : vector<8x128xf32>
    %13 = arith.subf %2, %12 : vector<8x128xf32>
    %14 = arith.mulf %13, %13 : vector<8x128xf32>
    %15 = arith.truncf %14 : vector<8x128xf32> to vector<8x128xbf16>
    %16 = arith.extf %15 : vector<8x128xbf16> to vector<8x128xf32>
    %17 = arith.subf %14, %16 : vector<8x128xf32>
    %18 = arith.truncf %17 : vector<8x128xf32> to vector<8x128xbf16>
    %cst_8 = arith.constant dense<0.000000e+00> : vector<8x128xf32>
    %19 = tpu.matmul %15, %3, %cst_8 {dimension_numbers = #tpu.dot_dimension_numbers<[1], [0], [0], [1], [0, 0, 1, 1], [], []>} : vector<8x128xbf16>, vector<128x128xbf16>, vector<8x128xf32> -> vector<8x128xf32>
    %cst_9 = arith.constant dense<0.000000e+00> : vector<8x128xf32>
    %20 = tpu.matmul %18, %3, %cst_9 {dimension_numbers = #tpu.dot_dimension_numbers<[1], [0], [0], [1], [0, 0, 1, 1], [], []>} : vector<8x128xbf16>, vector<128x128xbf16>, vector<8x128xf32> -> vector<8x128xf32>
    %21 = arith.addf %19, %20 : vector<8x128xf32>
    %cst_10 = arith.constant 1.562500e-02 : f32
    %22 = vector.broadcast %cst_10 : f32 to vector<8x128xf32>
    %23 = arith.mulf %21, %22 : vector<8x128xf32>
    %cst_11 = arith.constant 9.99999974E-6 : f32
    %24 = vector.broadcast %cst_11 : f32 to vector<8x128xf32>
    %25 = arith.addf %23, %24 : vector<8x128xf32>
    %26 = math.rsqrt %25 : vector<8x128xf32>
    %c0_12 = arith.constant 0 : index
    %c0_13 = arith.constant 0 : index
    %27 = vector.load %arg4[%c0_12, %c0_13] : memref<2x128xf32, #tpu.memory_space<vmem>>, vector<2x128xf32>
    %28 = vector.extract_strided_slice %27 {offsets = [0, 0], sizes = [1, 128], strides = [1, 1]} : vector<2x128xf32> to vector<1x128xf32>
    %29 = vector.shape_cast %28 : vector<1x128xf32> to vector<128xf32>
    %30 = vector.shape_cast %29 : vector<128xf32> to vector<1x128xf32>
    %31 = vector.broadcast %30 : vector<1x128xf32> to vector<8x128xf32>
    %32 = arith.mulf %26, %31 : vector<8x128xf32>
    %33 = arith.mulf %13, %32 : vector<8x128xf32>
    %34 = vector.extract_strided_slice %27 {offsets = [1, 0], sizes = [1, 128], strides = [1, 1]} : vector<2x128xf32> to vector<1x128xf32>
    %35 = vector.shape_cast %34 : vector<1x128xf32> to vector<128xf32>
    %36 = vector.shape_cast %35 : vector<128xf32> to vector<1x128xf32>
    %37 = vector.broadcast %36 : vector<1x128xf32> to vector<8x128xf32>
    %38 = arith.addf %33, %37 : vector<8x128xf32>
    %c0_14 = arith.constant 0 : index
    %c0_15 = arith.constant 0 : index
    %39 = vector.load %arg5[%c0_14, %c0_15] : memref<8x128xf32, #tpu.memory_space<vmem>>, vector<8x128xf32>
    tpu.vector_store %arg5[%c0_14, %c0_15], %38 {strides = array<i32>} : memref<8x128xf32, #tpu.memory_space<vmem>>, vector<8x128xf32>,
    return
  }
  func.func @transform_0(%arg0: i32) -> (i32, i32) {
    %c0_i32 = arith.constant 0 : i32
    %c0_i32_0 = arith.constant 0 : i32
    return %arg0, %c0_i32 : i32, i32
  }
  func.func @transform_1(%arg0: i32) -> (i32, i32) {
    %c0_i32 = arith.constant 0 : i32
    %c0_i32_0 = arith.constant 0 : i32
    %c0_i32_1 = arith.constant 0 : i32
    return %c0_i32, %c0_i32_0 : i32, i32
  }
  func.func @transform_2(%arg0: i32) -> (i32, i32) {
    %c0_i32 = arith.constant 0 : i32
    %c0_i32_0 = arith.constant 0 : i32
    %c0_i32_1 = arith.constant 0 : i32
    return %c0_i32, %c0_i32_0 : i32, i32
  }
  func.func @transform_3(%arg0: i32) -> (i32, i32) {
    %c0_i32 = arith.constant 0 : i32
    %c0_i32_0 = arith.constant 0 : i32
    %c0_i32_1 = arith.constant 0 : i32
    return %c0_i32, %c0_i32_0 : i32, i32
  }
  func.func @transform_4(%arg0: i32) -> (i32, i32) {
    %c0_i32 = arith.constant 0 : i32
    %c0_i32_0 = arith.constant 0 : i32
    return %arg0, %c0_i32 : i32, i32
  }
}

</mosaic_0001>

<llo_original>
// kernel: tpu_custom_call.1
$region0: #{tpu_custom_call.1}
  #allocation0 [shape = 'u32[]', space=smem, size = 0x4, offset = 0x4, fixed_abs, tag = 'smem constant byte address 0x4 - core index']
  #allocation1 [shape = 'u32[144,128]{1,0:T(1,128)}', space=vmem, size = 0x12000, scoped, tag = 'internal scratch']
  %s0 = inlined_call_operand.hbm [shape: f32[64,128], index: 0, kind: input, shape index: {}]
  %s1 = inlined_call_operand.hbm [shape: f32[128,128], index: 1, kind: input, shape index: {}]
  %s2 = inlined_call_operand.hbm [shape: bf16[128,128], index: 2, kind: input, shape index: {}]
  %s3 = inlined_call_operand.vmem [shape: f32[2,128], index: 3, kind: input, shape index: {}]
  %s4 = inlined_call_operand.hbm [shape: f32[64,128], index: 4, kind: output, shape index: {}]
  %s5 = sld [smem:[#allocation0]]
  $region61: #{tpu_custom_call.1} parent=0
    _
  %s7 = ssub.s32 1, %s5
  %s8 = scalar_select 0, %s7, %s5
  $region1: #{tpu_custom_call.1} parent=0
    #allocation2 [shape = 'u8[8192]{0}', space=vmem, size = 0x2000, scoped, tag = 'input window, operand 0']
    #allocation3 [shape = 's32[2]{0}', space=sflag, size = 0x8, scoped, tag = 'scoped memory for tpu_custom_call.1']
    #allocation4 [shape = 's32[2]{0}', space=sflag, size = 0x8, scoped, tag = 'scoped memory for tpu_custom_call.1']
    #allocation5 [shape = 'u8[65536]{0}', space=vmem, size = 0x10000, scoped, tag = 'input window, operand 1, single buffered']
    #allocation6 [shape = 's32[1]{0}', space=sflag, size = 0x4, scoped, tag = 'scoped memory for tpu_custom_call.1']
    #allocation7 [shape = 'u8[32768]{0}', space=vmem, size = 0x8000, scoped, tag = 'input window, operand 2, single buffered']
    #allocation8 [shape = 'u8[8192]{0}', space=vmem, size = 0x2000, scoped, tag = 'output window, operand 0']
    %9 = vsyncpa [#allocation3], 0
    %s10 = scalar_lea.sflag [#allocation3], 1
    %11 = vsyncpa %s10, 0
    %12 = vsyncpa [#allocation6], 0
    %13 = vsyncpa [#allocation4], 0
    %s14 = scalar_lea.sflag [#allocation4], 1
    %15 = vsyncpa %s14, 0
    loop: start=0, step=1, limit=10
    $region2: #{tpu_custom_call.1} parent=1 // loop_pre_header
      _
    $region3: #{tpu_custom_call.1} parent=1 // loop_header
      %s17 = sphi 0, %s21
      %p18 = scmp.ge.s32.totalorder %s17, 10
      %s27 = sphi 0, %s29
      %s30 = sphi 0, %s27
      %s31 = sphi 0, %s30
      %s47 = sphi 0, %s31
      %s51 = sphi 0, %s51
      %s53 = sphi 0, %s51
      %s54 = sphi 0, %s53
      %s68 = sphi 0, %s54
      %s72 = sphi 0, %s72
      %s74 = sphi 0, %s72
      %s75 = sphi 0, %s74
      %s89 = sphi 0, %s75
      %s93 = sphi 0, %s93
      %s95 = sphi 0, %s93
      %s96 = sphi 0, %s95
      %s110 = sphi 0, %s96
      %s116 = sphi 0, %s118
      %s119 = sphi 0, %s116
      %s120 = sphi 0, %s119
      %s136 = sphi 0, %s120
    $region4: #{tpu_custom_call.1} parent=1 // loop_header_branch
      %20 = sbr.rel (%p18) target = $region8
    $region5: #{tpu_custom_call.1} parent=1 // loop_body
      %s22 = ssub.s32 %s17, 1
      %s23 = ssub.s32 %s17, 2
      %s24 = sadd.s32 %s17, 1
      %s25 = ssub.s32 %s17, %s24
      %p26 = scmp.eq.s32.totalorder %s25, 0
      %s28 = sadd.s32 %s27, 1
      %s29 = scalar_select %p26, %s27, %s28
      %p32 = pneg %p26
      %p33 = scmp.eq.s32.totalorder %s17, 7
      %p34 = por %p32, %p33
      %p35 = scmp.ne.s32.totalorder %s27, %s30
      %p36 = scmp.eq.s32.totalorder %s17, 0
      %p37 = por %p35, %p36
      %p38 = scmp.ne.s32.totalorder %s27, %s30
      %p39 = scmp.eq.s32.totalorder %s22, 7
      %p40 = por %p38, %p39
      %p41 = scmp.ne.s32.totalorder %s30, %s31
      %p42 = scmp.eq.s32.totalorder %s22, 0
      %p43 = por %p41, %p42
      %p44 = scmp.ne.s32.totalorder %s30, %s31
      %p45 = scmp.eq.s32.totalorder %s23, 7
      %p46 = por %p44, %p45
      %p48 = scmp.ne.s32.totalorder %s31, %s47
      %p49 = scmp.eq.s32.totalorder %s23, 0
      %p50 = por %p48, %p49
      %s52 = sadd.s32 %s51, 1
      %p55 = scmp.eq.s32.totalorder %s17, 7
      %p56 = scmp.ne.s32.totalorder %s51, %s53
      %p57 = scmp.eq.s32.totalorder %s17, 0
      %p58 = por %p56, %p57
      %p59 = scmp.ne.s32.totalorder %s51, %s53
      %p60 = scmp.eq.s32.totalorder %s22, 7
      %p61 = por %p59, %p60
      %p62 = scmp.ne.s32.totalorder %s53, %s54
      %p63 = scmp.eq.s32.totalorder %s22, 0
      %p64 = por %p62, %p63
      %p65 = scmp.ne.s32.totalorder %s53, %s54
      %p66 = scmp.eq.s32.totalorder %s23, 7
      %p67 = por %p65, %p66
      %p69 = scmp.ne.s32.totalorder %s54, %s68
      %p70 = scmp.eq.s32.totalorder %s23, 0
      %p71 = por %p69, %p70
      %s73 = sadd.s32 %s72, 1
      %p76 = scmp.eq.s32.totalorder %s17, 7
      %p77 = scmp.ne.s32.totalorder %s72, %s74
      %p78 = scmp.eq.s32.totalorder %s17, 0
      %p79 = por %p77, %p78
      %p80 = scmp.ne.s32.totalorder %s72, %s74
      %p81 = scmp.eq.s32.totalorder %s22, 7
      %p82 = por %p80, %p81
      %p83 = scmp.ne.s32.totalorder %s74, %s75
      %p84 = scmp.eq.s32.totalorder %s22, 0
      %p85 = por %p83, %p84
      %p86 = scmp.ne.s32.totalorder %s74, %s75
      %p87 = scmp.eq.s32.totalorder %s23, 7
      %p88 = por %p86, %p87
      %p90 = scmp.ne.s32.totalorder %s75, %s89
      %p91 = scmp.eq.s32.totalorder %s23, 0
      %p92 = por %p90, %p91
      %s94 = sadd.s32 %s93, 1
      %p97 = scmp.eq.s32.totalorder %s17, 7
      %p98 = scmp.ne.s32.totalorder %s93, %s95
      %p99 = scmp.eq.s32.totalorder %s17, 0
      %p100 = por %p98, %p99
      %p101 = scmp.ne.s32.totalorder %s93, %s95
      %p102 = scmp.eq.s32.totalorder %s22, 7
      %p103 = por %p101, %p102
      %p104 = scmp.ne.s32.totalorder %s95, %s96
      %p105 = scmp.eq.s32.totalorder %s22, 0
      %p106 = por %p104, %p105
      %p107 = scmp.ne.s32.totalorder %s95, %s96
      %p108 = scmp.eq.s32.totalorder %s23, 7
      %p109 = por %p107, %p108
      %p111 = scmp.ne.s32.totalorder %s96, %s110
      %p112 = scmp.eq.s32.totalorder %s23, 0
      %p113 = por %p111, %p112
      %s114 = ssub.s32 %s17, %s24
      %p115 = scmp.eq.s32.totalorder %s114, 0
      %s117 = sadd.s32 %s116, 1
      %s118 = scalar_select %p115, %s116, %s117
      %p121 = pneg %p115
      %p122 = scmp.eq.s32.totalorder %s17, 7
      %p123 = por %p121, %p122
      %p124 = scmp.ne.s32.totalorder %s116, %s119
      %p125 = scmp.eq.s32.totalorder %s17, 0
      %p126 = por %p124, %p125
      %p127 = scmp.ne.s32.totalorder %s116, %s119
      %p128 = scmp.eq.s32.totalorder %s22, 7
      %p129 = por %p127, %p128
      %p130 = scmp.ne.s32.totalorder %s119, %s120
      %p131 = scmp.eq.s32.totalorder %s22, 0
      %p132 = por %p130, %p131
      %p133 = scmp.ne.s32.totalorder %s119, %s120
      %p134 = scmp.eq.s32.totalorder %s23, 7
      %p135 = por %p133, %p134
      %p137 = scmp.ne.s32.totalorder %s120, %s136
      %p138 = scmp.eq.s32.totalorder %s23, 0
      %p139 = por %p137, %p138
      %p140 = scmp.le.s32.totalorder 1, %s17
      %p141 = scmp.lt.s32.totalorder %s17, 9
      %p142 = pnand %p140, %p141
      %p143 = pneg %p142
      // Predicated region
      $region9: #{tpu_custom_call.1} parent=5 // pred_check
        _
      $region10: #{tpu_custom_call.1} parent=5 // pred_check_branch
        %145 = sbr.rel (%p142) target = $region12
      $region11: #{tpu_custom_call.1} parent=5 // pred_region
        %s146 = ssub.s32 %s17, 1
        // Predicated region
        $region13: #{tpu_custom_call.1} parent=11 // pred_check
          %p147 = pneg %p64
        $region14: #{tpu_custom_call.1} parent=11 // pred_check_branch
          %149 = sbr.rel (%p147) target = $region16
        $region15: #{tpu_custom_call.1} parent=11 // pred_region
          %s151 = ssub.s32 2048, 2048
          %152 = vsyncadd [#allocation6], %s151
          %s153 = sshll.u32 [#allocation5], 4
          %s154 = int_to_ptr.vmem [resolvable:$true] %s153
          %159 = dma.hbm_to_vmem [thread:$0]  %s1, 2048, %s154, [#allocation6], 128, 128, 8
        $region16: #{tpu_custom_call.1} parent=11 // pred_fallthru
          _
        // Predicated region
        $region17: #{tpu_custom_call.1} parent=11 // pred_check
          %p160 = pneg %p85
        $region18: #{tpu_custom_call.1} parent=11 // pred_check_branch
          %162 = sbr.rel (%p160) target = $region20
        $region19: #{tpu_custom_call.1} parent=11 // pred_region
          %s164 = ssub.s32 1024, 1024
          %165 = vsyncadd [#allocation6], %s164
          %s166 = sshll.u32 [#allocation7], 4
          %s167 = int_to_ptr.vmem [resolvable:$true] %s166
          %172 = dma.hbm_to_vmem [thread:$0]  %s2, 1024, %s167, [#allocation6], 64, 64, 4
        $region20: #{tpu_custom_call.1} parent=11 // pred_fallthru
          _
        // Predicated region
        $region21: #{tpu_custom_call.1} parent=11 // pred_check
          %p173 = pneg %p106
        $region22: #{tpu_custom_call.1} parent=11 // pred_check_branch
          %175 = sbr.rel (%p173) target = $region24
        $region23: #{tpu_custom_call.1} parent=11 // pred_region
          _
        $region24: #{tpu_custom_call.1} parent=11 // pred_fallthru
          _
      $region12: #{tpu_custom_call.1} parent=5 // pred_fallthru
        _
      %p176 = scmp.lt.s32.totalorder %s17, 8
      // Predicated region
      $region25: #{tpu_custom_call.1} parent=5 // pred_check
        %p177 = pneg %p176
      $region26: #{tpu_custom_call.1} parent=5 // pred_check_branch
        %179 = sbr.rel (%p177) target = $region28
      $region27: #{tpu_custom_call.1} parent=5 // pred_region
        // Predicated region
        $region29: #{tpu_custom_call.1} parent=27 // pred_check
          %p180 = pneg %p37
        $region30: #{tpu_custom_call.1} parent=27 // pred_check_branch
          %182 = sbr.rel (%p180) target = $region32
        $region31: #{tpu_custom_call.1} parent=27 // pred_region
          %s183 = sand.u32 %s27, 1
          %s184 = scalar_lea.sflag [#allocation3], %s183
          %s185 = sand.u32 %s27, 1
          %s186 = smul.addr %s185, 8
          %s187 = scalar_lea.vmem [#allocation2], %s186
          %s189 = ssub.s32 128, 128
          %190 = vsyncadd %s184, %s189
          %s191 = smul.addr %s17, 128
          %s192 = scalar_lea.hbm %s0, %s191
          %s194 = sshll.u32 %s187, 4
          %s195 = int_to_ptr.vmem [resolvable:$true] %s194
          %197 = dma.hbm_to_vmem [thread:$0]  %s192, 128, %s195, %s184
        $region32: #{tpu_custom_call.1} parent=27 // pred_fallthru
          _
      $region28: #{tpu_custom_call.1} parent=5 // pred_fallthru
        _
      %p198 = scmp.le.s32.totalorder 1, %s17
      %p199 = scmp.lt.s32.totalorder %s17, 9
      %p200 = pnand %p198, %p199
      %p201 = pneg %p200
      // Predicated region
      $region33: #{tpu_custom_call.1} parent=5 // pred_check
        _
      $region34: #{tpu_custom_call.1} parent=5 // pred_check_branch
        %203 = sbr.rel (%p200) target = $region36
      $region35: #{tpu_custom_call.1} parent=5 // pred_region
        %s204 = ssub.s32 %s17, 1
        %s205 = sand.u32 %s30, 1
        %s206 = scalar_lea.sflag [#allocation3], %s205
        %s207 = sand.u32 %s30, 1
        %s208 = smul.addr %s207, 8
        %s209 = scalar_lea.vmem [#allocation2], %s208
        // Predicated region
        $region37: #{tpu_custom_call.1} parent=35 // pred_check
          %p210 = pneg %p43
        $region38: #{tpu_custom_call.1} parent=35 // pred_check_branch
          %212 = sbr.rel (%p210) target = $region40
        $region39: #{tpu_custom_call.1} parent=35 // pred_region
          %213 = dma.done %s206, 128
        $region40: #{tpu_custom_call.1} parent=35 // pred_fallthru
          _
        // Predicated region
        $region41: #{tpu_custom_call.1} parent=35 // pred_check
          %p214 = pneg %p64
        $region42: #{tpu_custom_call.1} parent=35 // pred_check_branch
          %216 = sbr.rel (%p214) target = $region44
        $region43: #{tpu_custom_call.1} parent=35 // pred_region
          %217 = dma.done [#allocation6], 2048
        $region44: #{tpu_custom_call.1} parent=35 // pred_fallthru
          _
        // Predicated region
        $region45: #{tpu_custom_call.1} parent=35 // pred_check
          %p218 = pneg %p85
        $region46: #{tpu_custom_call.1} parent=35 // pred_check_branch
          %220 = sbr.rel (%p218) target = $region48
        $region47: #{tpu_custom_call.1} parent=35 // pred_region
          %221 = dma.done [#allocation6], 1024
        $region48: #{tpu_custom_call.1} parent=35 // pred_fallthru
          _
        %s222 = sand.u32 %s30, 1
        %s223 = scalar_lea.sflag [#allocation3], %s222
        %s224 = sand.u32 %s30, 1
        %s225 = smul.addr %s224, 8
        %s226 = scalar_lea.vmem [#allocation2], %s225
        %p227 = pneg %p43
        %p228 = pneg %p40
        %p229 = pneg %p64
        %p230 = pneg %p61
        %p231 = pneg %p85
        %p232 = pneg %p82
        %p233 = pneg %p106
        %p234 = pneg %p103
        %p235 = pneg %p132
        %p236 = pneg %p129
        %s237 = sand.u32 %s119, 1
        %s238 = scalar_lea.sflag [#allocation4], %s237
        %s239 = sand.u32 %s119, 1
        %s240 = smul.addr %s239, 8
        %s241 = scalar_lea.vmem [#allocation8], %s240
        %v243 = vld [vmem:[%s209] sm:$0xff]
        %v244 = vld [vmem:[#allocation5] sm:$0xff]
        %v245 = vld [vmem:[#allocation5 + $0x8] sm:$0xff]
        %v246 = vld [vmem:[#allocation5 + $0x10] sm:$0xff]
        %v247 = vld [vmem:[#allocation5 + $0x18] sm:$0xff]
        %v248 = vld [vmem:[#allocation5 + $0x20] sm:$0xff]
        %v249 = vld [vmem:[#allocation5 + $0x28] sm:$0xff]
        %v250 = vld [vmem:[#allocation5 + $0x30] sm:$0xff]
        %v251 = vld [vmem:[#allocation5 + $0x38] sm:$0xff]
        %v252 = vld [vmem:[#allocation5 + $0x40] sm:$0xff]
        %v253 = vld [vmem:[#allocation5 + $0x48] sm:$0xff]
        %v254 = vld [vmem:[#allocation5 + $0x50] sm:$0xff]
        %v255 = vld [vmem:[#allocation5 + $0x58] sm:$0xff]
        %v256 = vld [vmem:[#allocation5 + $0x60] sm:$0xff]
        %v257 = vld [vmem:[#allocation5 + $0x68] sm:$0xff]
        %v258 = vld [vmem:[#allocation5 + $0x70] sm:$0xff]
        %v259 = vld [vmem:[#allocation5 + $0x78] sm:$0xff]
        %260 = vmatprep.subr.mxu0 0.0
        %261 = vmatpush1.msra.mxu0 %v259
        %262 = vmatprep.subr.mxu0 0.0
        %263 = vmatpush1.msra.mxu0 %v258
        %264 = vmatprep.subr.mxu0 0.0
        %265 = vmatpush1.msra.mxu0 %v257
        %266 = vmatprep.subr.mxu0 0.0
        %267 = vmatpush1.msra.mxu0 %v256
        %268 = vmatprep.subr.mxu0 0.0
        %269 = vmatpush1.msra.mxu0 %v255
        %270 = vmatprep.subr.mxu0 0.0
        %271 = vmatpush1.msra.mxu0 %v254
        %272 = vmatprep.subr.mxu0 0.0
        %273 = vmatpush1.msra.mxu0 %v253
        %274 = vmatprep.subr.mxu0 0.0
        %275 = vmatpush1.msra.mxu0 %v252
        %276 = vmatprep.subr.mxu0 0.0
        %277 = vmatpush1.msra.mxu0 %v251
        %278 = vmatprep.subr.mxu0 0.0
        %279 = vmatpush1.msra.mxu0 %v250
        %280 = vmatprep.subr.mxu0 0.0
        %281 = vmatpush1.msra.mxu0 %v249
        %282 = vmatprep.subr.mxu0 0.0
        %283 = vmatpush1.msra.mxu0 %v248
        %284 = vmatprep.subr.mxu0 0.0
        %285 = vmatpush1.msra.mxu0 %v247
        %286 = vmatprep.subr.mxu0 0.0
        %287 = vmatpush1.msra.mxu0 %v246
        %288 = vmatprep.subr.mxu0 0.0
        %289 = vmatpush1.msra.mxu0 %v245
        %290 = vmatprep.subr.mxu0 0.0
        %291 = vmatpush1.msra.mxu0 %v244
        %292 = vmatprep.subr.mxu0 0.0
        %293 = vmatpush2.msra.mxu0 0.0
        %294 = vmatprep.subr.mxu0 0.0
        %295 = vmatpush2.msra.mxu0 0.0
        %296 = vmatprep.subr.mxu0 0.0
        %297 = vmatpush2.msra.mxu0 0.0
        %298 = vmatprep.subr.mxu0 0.0
        %299 = vmatpush2.msra.mxu0 0.0
        %300 = vmatprep.subr.mxu0 0.0
        %301 = vmatpush2.msra.mxu0 0.0
        %302 = vmatprep.subr.mxu0 0.0
        %303 = vmatpush2.msra.mxu0 0.0
        %304 = vmatprep.subr.mxu0 0.0
        %305 = vmatpush2.msra.mxu0 0.0
        %306 = vmatprep.subr.mxu0 0.0
        %307 = vmatpush2.msra.mxu0 0.0
        %308 = vmatprep.subr.mxu0 0.0
        %309 = vmatpush2.msra.mxu0 0.0
        %310 = vmatprep.subr.mxu0 0.0
        %311 = vmatpush2.msra.mxu0 0.0
        %312 = vmatprep.subr.mxu0 0.0
        %313 = vmatpush2.msra.mxu0 0.0
        %314 = vmatprep.subr.mxu0 0.0
        %315 = vmatpush2.msra.mxu0 0.0
        %316 = vmatprep.subr.mxu0 0.0
        %317 = vmatpush2.msra.mxu0 0.0
        %318 = vmatprep.subr.mxu0 0.0
        %319 = vmatpush2.msra.mxu0 0.0
        %320 = vmatprep.subr.mxu0 0.0
        %321 = vmatpush2.msra.mxu0 0.0
        %322 = vmatprep.subr.mxu0 0.0
        %323 = vmatpush2.msra.mxu0 0.0
        %324 = vmatprep.mubr.f32.mxu0 0.0
        %325 = vmatmul.mubr.f32.gmra.mxu0 %v243
        %v326 = vpop.f32.mrf.mxu0
        %v327 = vadd.f32 0.0, %v326
        %v328 = vpop.f32.mrf.mxu0
        %329 = vdwg.mxu0
        %v330 = vld [vmem:[#allocation7] sm:$0xf]
        %v331 = vld [vmem:[#allocation7 + $0x4] sm:$0xf]
        %v332 = vld [vmem:[#allocation7 + $0x8] sm:$0xf]
        %v333 = vld [vmem:[#allocation7 + $0xc] sm:$0xf]
        %v334 = vld [vmem:[#allocation7 + $0x10] sm:$0xf]
        %v335 = vld [vmem:[#allocation7 + $0x14] sm:$0xf]
        %v336 = vld [vmem:[#allocation7 + $0x18] sm:$0xf]
        %v337 = vld [vmem:[#allocation7 + $0x1c] sm:$0xf]
        %v338 = vld [vmem:[#allocation7 + $0x20] sm:$0xf]
        %v339 = vld [vmem:[#allocation7 + $0x24] sm:$0xf]
        %v340 = vld [vmem:[#allocation7 + $0x28] sm:$0xf]
        %v341 = vld [vmem:[#allocation7 + $0x2c] sm:$0xf]
        %v342 = vld [vmem:[#allocation7 + $0x30] sm:$0xf]
        %v343 = vld [vmem:[#allocation7 + $0x34] sm:$0xf]
        %v344 = vld [vmem:[#allocation7 + $0x38] sm:$0xf]
        %v345 = vld [vmem:[#allocation7 + $0x3c] sm:$0xf]
        %v346 = vpack.c.bf16 %v327, %v327
        %v347 = vunpack.c.l.bf16 %v346
        %v348 = vsub.f32 %v327, %v347
        %v349 = vpack.c.bf16 %v348, %v348
        %v366 = vunpack.c.l.b16 %v330
        %v367 = vunpack.c.l.b16 %v331
        %v368 = vunpack.c.l.b16 %v332
        %v369 = vunpack.c.l.b16 %v333
        %v370 = vunpack.c.l.b16 %v334
        %v371 = vunpack.c.l.b16 %v335
        %v372 = vunpack.c.l.b16 %v336
        %v373 = vunpack.c.l.b16 %v337
        %v374 = vunpack.c.l.b16 %v338
        %v375 = vunpack.c.l.b16 %v339
        %v376 = vunpack.c.l.b16 %v340
        %v377 = vunpack.c.l.b16 %v341
        %v378 = vunpack.c.l.b16 %v342
        %v379 = vunpack.c.l.b16 %v343
        %v380 = vunpack.c.l.b16 %v344
        %v381 = vunpack.c.l.b16 %v345
        %v382 = vpack.c.b16 %v367, %v366
        %v383 = vpack.c.b16 %v369, %v368
        %v384 = vpack.c.b16 %v371, %v370
        %v385 = vpack.c.b16 %v373, %v372
        %v386 = vpack.c.b16 %v375, %v374
        %v387 = vpack.c.b16 %v377, %v376
        %v388 = vpack.c.b16 %v379, %v378
        %v389 = vpack.c.b16 %v381, %v380
        %398 = vmatprep.subr.bf16.mxu0 0
        %399 = vmatpush1.bf16.msra.mxu0 %v389
        %400 = vmatprep.subr.bf16.mxu0 0
        %401 = vmatpush1.bf16.msra.mxu0 %v388
        %402 = vmatprep.subr.bf16.mxu0 0
        %403 = vmatpush1.bf16.msra.mxu0 %v387
        %404 = vmatprep.subr.bf16.mxu0 0
        %405 = vmatpush1.bf16.msra.mxu0 %v386
        %406 = vmatprep.subr.bf16.mxu0 0
        %407 = vmatpush1.bf16.msra.mxu0 %v385
        %408 = vmatprep.subr.bf16.mxu0 0
        %409 = vmatpush1.bf16.msra.mxu0 %v384
        %410 = vmatprep.subr.bf16.mxu0 0
        %411 = vmatpush1.bf16.msra.mxu0 %v383
        %412 = vmatprep.subr.bf16.mxu0 0
        %413 = vmatpush1.bf16.msra.mxu0 %v382
        %414 = vmatprep.subr.bf16.mxu0 0
        %415 = vmatpush2.bf16.msra.mxu0 0
        %416 = vmatprep.subr.bf16.mxu0 0
        %417 = vmatpush2.bf16.msra.mxu0 0
        %418 = vmatprep.subr.bf16.mxu0 0
        %419 = vmatpush2.bf16.msra.mxu0 0
        %420 = vmatprep.subr.bf16.mxu0 0
        %421 = vmatpush2.bf16.msra.mxu0 0
        %422 = vmatprep.subr.bf16.mxu0 0
        %423 = vmatpush2.bf16.msra.mxu0 0
        %424 = vmatprep.subr.bf16.mxu0 0
        %425 = vmatpush2.bf16.msra.mxu0 0
        %426 = vmatprep.subr.bf16.mxu0 0
        %427 = vmatpush2.bf16.msra.mxu0 0
        %428 = vmatprep.subr.bf16.mxu0 0
        %429 = vmatpush2.bf16.msra.mxu0 0
        %430 = vmatprep.mubr.bf16.mxu0 0
        %431 = vmatmul.mubr.bf16.gmra.mxu0 %v349
        %v432 = vpop.f32.mrf.mxu0
        %v433 = vadd.f32 0.0, %v432
        %v434 = vpop.f32.mrf.mxu0
        %v435 = vpop.f32.mrf.mxu0
        %v436 = vpop.f32.mrf.mxu0
        %437 = vdwg.mxu0
        %438 = vmatprep.subr.bf16.mxu0 0
        %439 = vmatpush1.bf16.msra.mxu0 %v389
        %440 = vmatprep.subr.bf16.mxu0 0
        %441 = vmatpush1.bf16.msra.mxu0 %v388
        %442 = vmatprep.subr.bf16.mxu0 0
        %443 = vmatpush1.bf16.msra.mxu0 %v387
        %444 = vmatprep.subr.bf16.mxu0 0
        %445 = vmatpush1.bf16.msra.mxu0 %v386
        %446 = vmatprep.subr.bf16.mxu0 0
        %447 = vmatpush1.bf16.msra.mxu0 %v385
        %448 = vmatprep.subr.bf16.mxu0 0
        %449 = vmatpush1.bf16.msra.mxu0 %v384
        %450 = vmatprep.subr.bf16.mxu0 0
        %451 = vmatpush1.bf16.msra.mxu0 %v383
        %452 = vmatprep.subr.bf16.mxu0 0
        %453 = vmatpush1.bf16.msra.mxu0 %v382
        %454 = vmatprep.subr.bf16.mxu0 0
        %455 = vmatpush2.bf16.msra.mxu0 0
        %456 = vmatprep.subr.bf16.mxu0 0
        %457 = vmatpush2.bf16.msra.mxu0 0
        %458 = vmatprep.subr.bf16.mxu0 0
        %459 = vmatpush2.bf16.msra.mxu0 0
        %460 = vmatprep.subr.bf16.mxu0 0
        %461 = vmatpush2.bf16.msra.mxu0 0
        %462 = vmatprep.subr.bf16.mxu0 0
        %463 = vmatpush2.bf16.msra.mxu0 0
        %464 = vmatprep.subr.bf16.mxu0 0
        %465 = vmatpush2.bf16.msra.mxu0 0
        %466 = vmatprep.subr.bf16.mxu0 0
        %467 = vmatpush2.bf16.msra.mxu0 0
        %468 = vmatprep.subr.bf16.mxu0 0
        %469 = vmatpush2.bf16.msra.mxu0 0
        %470 = vmatprep.mubr.bf16.mxu0 0
        %471 = vmatmul.mubr.bf16.gmra.mxu0 %v346
        %v472 = vpop.f32.mrf.mxu0
        %v473 = vadd.f32 %v433, %v472
        %v474 = vpop.f32.mrf.mxu0
        %v475 = vpop.f32.mrf.mxu0
        %v476 = vpop.f32.mrf.mxu0
        %477 = vdwg.mxu0
        %v478 = vmul.f32 %v473, 0.015625
        %v479 = vsub.f32 %v327, %v478
        %v480 = vmul.f32 %v479, %v479
        %v481 = vpack.c.bf16 %v480, %v480
        %v482 = vunpack.c.l.bf16 %v481
        %v483 = vsub.f32 %v480, %v482
        %v484 = vpack.c.bf16 %v483, %v483
        %485 = vmatprep.subr.bf16.mxu0 0
        %486 = vmatpush1.bf16.msra.mxu0 %v389
        %487 = vmatprep.subr.bf16.mxu0 0
        %488 = vmatpush1.bf16.msra.mxu0 %v388
        %489 = vmatprep.subr.bf16.mxu0 0
        %490 = vmatpush1.bf16.msra.mxu0 %v387
        %491 = vmatprep.subr.bf16.mxu0 0
        %492 = vmatpush1.bf16.msra.mxu0 %v386
        %493 = vmatprep.subr.bf16.mxu0 0
        %494 = vmatpush1.bf16.msra.mxu0 %v385
        %495 = vmatprep.subr.bf16.mxu0 0
        %496 = vmatpush1.bf16.msra.mxu0 %v384
        %497 = vmatprep.subr.bf16.mxu0 0
        %498 = vmatpush1.bf16.msra.mxu0 %v383
        %499 = vmatprep.subr.bf16.mxu0 0
        %500 = vmatpush1.bf16.msra.mxu0 %v382
        %501 = vmatprep.subr.bf16.mxu0 0
        %502 = vmatpush2.bf16.msra.mxu0 0
        %503 = vmatprep.subr.bf16.mxu0 0
        %504 = vmatpush2.bf16.msra.mxu0 0
        %505 = vmatprep.subr.bf16.mxu0 0
        %506 = vmatpush2.bf16.msra.mxu0 0
        %507 = vmatprep.subr.bf16.mxu0 0
        %508 = vmatpush2.bf16.msra.mxu0 0
        %509 = vmatprep.subr.bf16.mxu0 0
        %510 = vmatpush2.bf16.msra.mxu0 0
        %511 = vmatprep.subr.bf16.mxu0 0
        %512 = vmatpush2.bf16.msra.mxu0 0
        %513 = vmatprep.subr.bf16.mxu0 0
        %514 = vmatpush2.bf16.msra.mxu0 0
        %515 = vmatprep.subr.bf16.mxu0 0
        %516 = vmatpush2.bf16.msra.mxu0 0
        %517 = vmatprep.mubr.bf16.mxu0 0
        %518 = vmatmul.mubr.bf16.gmra.mxu0 %v484
        %v519 = vpop.f32.mrf.mxu0
        %v520 = vadd.f32 0.0, %v519
        %v521 = vpop.f32.mrf.mxu0
        %v522 = vpop.f32.mrf.mxu0
        %v523 = vpop.f32.mrf.mxu0
        %524 = vdwg.mxu0
        %525 = vmatprep.subr.bf16.mxu0 0
        %526 = vmatpush1.bf16.msra.mxu0 %v389
        %527 = vmatprep.subr.bf16.mxu0 0
        %528 = vmatpush1.bf16.msra.mxu0 %v388
        %529 = vmatprep.subr.bf16.mxu0 0
        %530 = vmatpush1.bf16.msra.mxu0 %v387
        %531 = vmatprep.subr.bf16.mxu0 0
        %532 = vmatpush1.bf16.msra.mxu0 %v386
        %533 = vmatprep.subr.bf16.mxu0 0
        %534 = vmatpush1.bf16.msra.mxu0 %v385
        %535 = vmatprep.subr.bf16.mxu0 0
        %536 = vmatpush1.bf16.msra.mxu0 %v384
        %537 = vmatprep.subr.bf16.mxu0 0
        %538 = vmatpush1.bf16.msra.mxu0 %v383
        %539 = vmatprep.subr.bf16.mxu0 0
        %540 = vmatpush1.bf16.msra.mxu0 %v382
        %541 = vmatprep.subr.bf16.mxu0 0
        %542 = vmatpush2.bf16.msra.mxu0 0
        %543 = vmatprep.subr.bf16.mxu0 0
        %544 = vmatpush2.bf16.msra.mxu0 0
        %545 = vmatprep.subr.bf16.mxu0 0
        %546 = vmatpush2.bf16.msra.mxu0 0
        %547 = vmatprep.subr.bf16.mxu0 0
        %548 = vmatpush2.bf16.msra.mxu0 0
        %549 = vmatprep.subr.bf16.mxu0 0
        %550 = vmatpush2.bf16.msra.mxu0 0
        %551 = vmatprep.subr.bf16.mxu0 0
        %552 = vmatpush2.bf16.msra.mxu0 0
        %553 = vmatprep.subr.bf16.mxu0 0
        %554 = vmatpush2.bf16.msra.mxu0 0
        %555 = vmatprep.subr.bf16.mxu0 0
        %556 = vmatpush2.bf16.msra.mxu0 0
        %557 = vmatprep.mubr.bf16.mxu0 0
        %558 = vmatmul.mubr.bf16.gmra.mxu0 %v481
        %v559 = vpop.f32.mrf.mxu0
        %v560 = vadd.f32 %v520, %v559
        %v561 = vpop.f32.mrf.mxu0
        %v562 = vpop.f32.mrf.mxu0
        %v563 = vpop.f32.mrf.mxu0
        %564 = vdwg.mxu0
        %v565 = vmul.f32 %v560, 0.015625
        %v566 = vadd.f32 %v565, 1e-05
        %v567 = vrsqrt.pop %v566
        %v568 = vld [vmem:[%s3] sm:$0x3]
        %v569 = vlaneseq
        %v570 = vshrl.u32 %v569, 7
        %v571 = vsub.s32 0, %v570
        %v572 = vrot.slane %v568, %v571
        %v573 = vmul.f32 %v567, %v572
        %v574 = vmul.f32 %v479, %v573
        %v575 = vlaneseq
        %v576 = vshrl.u32 %v575, 7
        %v577 = vsub.s32 1, %v576
        %v578 = vrot.slane %v568, %v577
        %v579 = vadd.f32 %v574, %v578
        %580 = vst [vmem:[%s241] sm:$0xff] %v579
        %s581 = sand.u32 %s119, 1
        %s582 = scalar_lea.sflag [#allocation4], %s581
        %s583 = sand.u32 %s119, 1
        %s584 = smul.addr %s583, 8
        %s585 = scalar_lea.vmem [#allocation8], %s584
        // Predicated region
        $region49: #{tpu_custom_call.1} parent=35 // pred_check
          %p586 = pneg %p129
        $region50: #{tpu_custom_call.1} parent=35 // pred_check_branch
          %588 = sbr.rel (%p586) target = $region52
        $region51: #{tpu_custom_call.1} parent=35 // pred_region
          %s590 = ssub.s32 128, 128
          %591 = vsyncadd %s582, %s590
          %s592 = smul.addr %s22, 128
          %s593 = scalar_lea.hbm %s4, %s592
          %s595 = sshll.u32 %s585, 4
          %s596 = int_to_ptr.vmem [resolvable:$true] %s595
          %598 = dma.vmem_to_hbm [thread:$0]  %s596, 128, %s593, %s582
        $region52: #{tpu_custom_call.1} parent=35 // pred_fallthru
          _
      $region36: #{tpu_custom_call.1} parent=5 // pred_fallthru
        _
      %p599 = scmp.le.s32.totalorder 2, %s17
      // Predicated region
      $region53: #{tpu_custom_call.1} parent=5 // pred_check
        %p600 = pneg %p599
      $region54: #{tpu_custom_call.1} parent=5 // pred_check_branch
        %602 = sbr.rel (%p600) target = $region56
      $region55: #{tpu_custom_call.1} parent=5 // pred_region
        %s603 = ssub.s32 %s17, 2
        // Predicated region
        $region57: #{tpu_custom_call.1} parent=55 // pred_check
          %p604 = pneg %p135
        $region58: #{tpu_custom_call.1} parent=55 // pred_check_branch
          %606 = sbr.rel (%p604) target = $region60
        $region59: #{tpu_custom_call.1} parent=55 // pred_region
          %s607 = sand.u32 %s120, 1
          %s608 = scalar_lea.sflag [#allocation4], %s607
          %s609 = sand.u32 %s120, 1
          %s610 = smul.addr %s609, 8
          %s611 = scalar_lea.vmem [#allocation8], %s610
          %612 = dma.done %s608, 128
        $region60: #{tpu_custom_call.1} parent=55 // pred_fallthru
          _
      $region56: #{tpu_custom_call.1} parent=5 // pred_fallthru
        _
    $region6: #{tpu_custom_call.1} parent=1 // loop_footer
      %s21 = sadd.s32 1, %s17
    $region7: #{tpu_custom_call.1} parent=1 // loop_footer_branch
      %16 = sbr.rel target = $region3
    $region8: #{tpu_custom_call.1} parent=1 // loop_exit
      _
    %613 = vsyncpa [#allocation3], 1
    %s614 = scalar_lea.sflag [#allocation3], 1
    %615 = vsyncpa %s614, 1
    %616 = vsyncpa [#allocation6], 1
    %617 = vsyncpa [#allocation4], 1
    %s618 = scalar_lea.sflag [#allocation4], 1
    %619 = vsyncpa %s618, 1

</llo_original>
